<compile_context>
chip_gen: v6e
topology: v6e:2x2x1
jax: 0.10.0
libtpu: 0.0.40
codegen_flags: <defaults>
</compile_context>

<pallas_src>
import functools
import math

import jax
import jax.numpy as jnp
import numpy as np
from jax.experimental import pallas as pl
from jax.experimental.pallas import tpu as pltpu


# ------------------------------ fused kernel ---------------------------------------
def fused_attn_kernel(x_ref, w_ref, cos_ref, sin_ref, o_ref,
                      *, num_heads, head_size, hidden):
    # x_ref:   (ts, hidden)        bf16
    # w_ref:   (hidden, 5*hidden)  bf16   [Wq | Wq@Rot | Wk | Wk@Rot | Wv]
    # cos_ref: (ts, head_size)     f32
    # sin_ref: (ts, head_size)     f32
    # o_ref:   (ts, hidden)        f32
    qkv = jnp.dot(x_ref[...], w_ref[...],
                  preferred_element_type=jnp.float32)        # (ts, 5*hidden) f32
    cos = cos_ref[...]                                        # (ts, D) f32
    sin = sin_ref[...]
    scale = 1.0 / math.sqrt(head_size)
    d = head_size

    def chunk(block, h):           # static lane slice of head h inside projection `block`
        off = block * hidden + h * d
        return qkv[:, off:off + d]

    # RoPE per head (same cos/sin for every head; rotate_half already folded into W).
    q_h = [chunk(0, h) * cos + chunk(1, h) * sin for h in range(num_heads)]
    k_h = [chunk(2, h) * cos + chunk(3, h) * sin for h in range(num_heads)]
    v_h = [chunk(4, h) for h in range(num_heads)]

    # Per-position attention over the head axis: exactly H x H scores per row.
    ctx_chunks = []
    for h in range(num_heads):
        s = [jnp.sum(q_h[h] * k_h[g], axis=-1, keepdims=True) * scale
             for g in range(num_heads)]                       # each (ts, 1) f32
        m = s[0]
        for g in range(1, num_heads):
            m = jnp.maximum(m, s[g])
        e = [jnp.exp(sg - m) for sg in s]
        denom = e[0]
        for g in range(1, num_heads):
            denom = denom + e[g]
        inv = pl.reciprocal(denom, approx=True)               # EUP, free slot
        acc = (e[0] * inv) * v_h[0]
        for g in range(1, num_heads):
            acc = acc + (e[g] * inv) * v_h[g]
        ctx_chunks.append(acc)                                # (ts, D)

    # Lane-dense store: (ts, hidden).
    o_ref[...] = jnp.concatenate(ctx_chunks, axis=-1).astype(o_ref.dtype)


# ---------------------------------- wrapper -----------------------------------------
def _pick_seq_tile(seq):
    for cand in (256, 128, 64, 32, 16, 8):
        if seq % cand == 0:
            return cand
    return seq   # tiny / odd seq: single full block (allowed: full-dim block)


def self_attention_forward(x, wq_t, wk_t, wv_t, cos_tab, sin_tab, num_heads):
    """x: (bs, seq, hidden) f32; w*_t: (hidden, hidden) stored as W.T so y = x @ w;
    cos_tab/sin_tab: (seq, head_size) f32."""
    bs, seq, hidden = x.shape
    head_size = hidden // num_heads
    half = head_size // 2

    # rotate_half(t) == t @ rot  (per head chunk); block-diagonal over heads.
    rot = jnp.zeros((head_size, head_size), jnp.float32)
    rot = rot.at[jnp.arange(half) + half, jnp.arange(half)].set(-1.0)
    rot = rot.at[jnp.arange(half), jnp.arange(half) + half].set(1.0)
    rot_full = jnp.kron(jnp.eye(num_heads, dtype=jnp.float32), rot)   # (hidden, hidden)

    # Fused weight: one bf16 MXU matmul for all projections + the folded rotation.
    w_big = jnp.concatenate(
        [wq_t, wq_t @ rot_full, wk_t, wk_t @ rot_full, wv_t], axis=1
    ).astype(jnp.bfloat16)                                            # (hidden, 5*hidden)
    x_bf16 = x.astype(jnp.bfloat16)

    ts = _pick_seq_tile(seq)
    grid = (bs, seq // ts)

    kernel = functools.partial(
        fused_attn_kernel, num_heads=num_heads, head_size=head_size, hidden=hidden)

    out = pl.pallas_call(
        kernel,
        grid=grid,
        in_specs=[
            pl.BlockSpec((None, ts, hidden), lambda b, s: (b, s, 0)),  # x row tile
            pl.BlockSpec((hidden, 5 * hidden), lambda b, s: (0, 0)),   # fused weight (resident)
            pl.BlockSpec((ts, head_size), lambda b, s: (s, 0)),        # cos slice (by position)
            pl.BlockSpec((ts, head_size), lambda b, s: (s, 0)),        # sin slice
        ],
        out_specs=pl.BlockSpec((None, ts, hidden), lambda b, s: (b, s, 0)),
        out_shape=jax.ShapeDtypeStruct((bs, seq, hidden), jnp.float32),
        compiler_params=pltpu.CompilerParams(
            dimension_semantics=("parallel", "parallel"),
            vmem_limit_bytes=32 * 1024 * 1024,   # safe on v5e/v6e (128 MiB) and v7x (64 MiB)
        ),
    )(x_bf16, w_big, cos_tab.astype(jnp.float32), sin_tab.astype(jnp.float32))
    return out


# ----------------------------- pure-JAX reference ------------------------------------
def reference_forward(x, wq_t, wk_t, wv_t, cos_tab, sin_tab, num_heads):
    bs, seq, hidden = x.shape
    head_size = hidden // num_heads
    half = head_size // 2

    q = jnp.einsum("bsh,ho->bso", x, wq_t, precision="highest")
    k = jnp.einsum("bsh,ho->bso", x, wk_t, precision="highest")
    v = jnp.einsum("bsh,ho->bso", x, wv_t, precision="highest")
    q = q.reshape(bs, seq, num_heads, head_size)
    k = k.reshape(bs, seq, num_heads, head_size)
    v = v.reshape(bs, seq, num_heads, head_size)

    cos = cos_tab[None, :, None, :]
    sin = sin_tab[None, :, None, :]

    def rot_half(t):
        return jnp.concatenate([-t[..., half:], t[..., :half]], axis=-1)

    q = q * cos + rot_half(q) * sin
    k = k * cos + rot_half(k) * sin

    scores = jnp.einsum("bshd,bsgd->bshg", q, k, precision="highest") / math.sqrt(head_size)
    probs = jax.nn.softmax(scores, axis=-1)
    ctx = jnp.einsum("bshg,bsgd->bshd", probs, v, precision="highest")
    return ctx.reshape(bs, seq, hidden)


if __name__ == "__main__":
    bs, seq, hidden, num_heads = 2, 8, 32, 4
    head_size = hidden // num_heads

    key = jax.random.PRNGKey(0)
    kx, kq, kk, kv = jax.random.split(key, 4)
    bound = 1.0 / math.sqrt(hidden)
    # nn.Linear(hidden, hidden, bias=False) weights, stored pre-transposed (in, out).
    wq_t = jax.random.uniform(kq, (hidden, hidden), jnp.float32, -bound, bound)
    wk_t = jax.random.uniform(kk, (hidden, hidden), jnp.float32, -bound, bound)
    wv_t = jax.random.uniform(kv, (hidden, hidden), jnp.float32, -bound, bound)

    x = jax.random.normal(kx, (bs, seq, hidden), jnp.float32)

    # RoPE cos/sin tables, shape (seq, head_size).
    inv_freq = 1.0 / (10000.0 ** (jnp.arange(0, head_size, 2, dtype=jnp.float32) / head_size))
    freqs = jnp.arange(seq, dtype=jnp.float32)[:, None] * inv_freq[None, :]
    emb = jnp.concatenate([freqs, freqs], axis=-1)
    cos_tab, sin_tab = jnp.cos(emb), jnp.sin(emb)

    out = self_attention_forward(x, wq_t, wk_t, wv_t, cos_tab, sin_tab, num_heads)
    out = jax.block_until_ready(out)

    ref = reference_forward(x, wq_t, wk_t, wv_t, cos_tab, sin_tab, num_heads)
    assert out.shape == (bs, seq, hidden)
    # bf16 MXU inputs vs f32 reference -> ~0.1-1% expected deviation.
    np.testing.assert_allclose(np.asarray(out), np.asarray(ref), rtol=2e-2, atol=2e-2)
    print("KERNEL_OK")
</pallas_src>

<mosaic_0001>
module attributes {stable_mosaic.version = 11 : i64} {
  func.func @fused_attn_kernel(%arg0: i32, %arg1: i32, %arg2: memref<1x8x32xbf16, #tpu.memory_space<vmem>>, %arg3: memref<32x160xbf16, #tpu.memory_space<vmem>>, %arg4: memref<8x8xf32, #tpu.memory_space<vmem>>, %arg5: memref<8x8xf32, #tpu.memory_space<vmem>>, %arg6: memref<1x8x32xf32, #tpu.memory_space<vmem>>) attributes {dimension_semantics = [#tpu.dimension_semantics<parallel>, #tpu.dimension_semantics<parallel>], iteration_bounds = array<i64: 2, 1>, scalar_prefetch = 0 : i64, scratch_operands = 0 : i64, tpu.core_type = #tpu.core_type<tc>, window_params = [{transform_indices = @transform_0, window_bounds = array<i64: 1, 8, 32>}, {pipeline_mode = #tpu.pipeline_mode<synchronous>, transform_indices = @transform_1, window_bounds = array<i64: 32, 160>}, {transform_indices = @transform_2, window_bounds = array<i64: 8, 8>}, {transform_indices = @transform_3, window_bounds = array<i64: 8, 8>}, {transform_indices = @transform_4, window_bounds = array<i64: 1, 8, 32>}]} {
    %c0 = arith.constant 0 : index
    %c0_0 = arith.constant 0 : index
    %c0_1 = arith.constant 0 : index
    %0 = vector.load %arg2[%c0, %c0_0, %c0_1] : memref<1x8x32xbf16, #tpu.memory_space<vmem>>, vector<1x8x32xbf16>
    %1 = vector.shape_cast %0 : vector<1x8x32xbf16> to vector<8x32xbf16>
    %c0_2 = arith.constant 0 : index
    %c0_3 = arith.constant 0 : index
    %2 = vector.load %arg3[%c0_2, %c0_3] : memref<32x160xbf16, #tpu.memory_space<vmem>>, vector<32x160xbf16>
    %cst = arith.constant dense<0.000000e+00> : vector<8x160xf32>
    %3 = tpu.matmul %1, %2, %cst {dimension_numbers = #tpu.dot_dimension_numbers<[1], [0], [0], [1], [0, 0, 1, 1], [], []>} : vector<8x32xbf16>, vector<32x160xbf16>, vector<8x160xf32> -> vector<8x160xf32>
    %c0_4 = arith.constant 0 : index
    %c0_5 = arith.constant 0 : index
    %4 = vector.load %arg4[%c0_4, %c0_5] : memref<8x8xf32, #tpu.memory_space<vmem>>, vector<8x8xf32>
    %c0_6 = arith.constant 0 : index
    %c0_7 = arith.constant 0 : index
    %5 = vector.load %arg5[%c0_6, %c0_7] : memref<8x8xf32, #tpu.memory_space<vmem>>, vector<8x8xf32>
    %6 = vector.extract_strided_slice %3 {offsets = [0, 0], sizes = [8, 8], strides = [1, 1]} : vector<8x160xf32> to vector<8x8xf32>
    %7 = arith.mulf %6, %4 : vector<8x8xf32>
    %8 = vector.extract_strided_slice %3 {offsets = [0, 32], sizes = [8, 8], strides = [1, 1]} : vector<8x160xf32> to vector<8x8xf32>
    %9 = arith.mulf %8, %5 : vector<8x8xf32>
    %10 = arith.addf %7, %9 : vector<8x8xf32>
    %11 = vector.extract_strided_slice %3 {offsets = [0, 8], sizes = [8, 8], strides = [1, 1]} : vector<8x160xf32> to vector<8x8xf32>
    %12 = arith.mulf %11, %4 : vector<8x8xf32>
    %13 = vector.extract_strided_slice %3 {offsets = [0, 40], sizes = [8, 8], strides = [1, 1]} : vector<8x160xf32> to vector<8x8xf32>
    %14 = arith.mulf %13, %5 : vector<8x8xf32>
    %15 = arith.addf %12, %14 : vector<8x8xf32>
    %16 = vector.extract_strided_slice %3 {offsets = [0, 16], sizes = [8, 8], strides = [1, 1]} : vector<8x160xf32> to vector<8x8xf32>
    %17 = arith.mulf %16, %4 : vector<8x8xf32>
    %18 = vector.extract_strided_slice %3 {offsets = [0, 48], sizes = [8, 8], strides = [1, 1]} : vector<8x160xf32> to vector<8x8xf32>
    %19 = arith.mulf %18, %5 : vector<8x8xf32>
    %20 = arith.addf %17, %19 : vector<8x8xf32>
    %21 = vector.extract_strided_slice %3 {offsets = [0, 24], sizes = [8, 8], strides = [1, 1]} : vector<8x160xf32> to vector<8x8xf32>
    %22 = arith.mulf %21, %4 : vector<8x8xf32>
    %23 = vector.extract_strided_slice %3 {offsets = [0, 56], sizes = [8, 8], strides = [1, 1]} : vector<8x160xf32> to vector<8x8xf32>
    %24 = arith.mulf %23, %5 : vector<8x8xf32>
    %25 = arith.addf %22, %24 : vector<8x8xf32>
    %26 = vector.extract_strided_slice %3 {offsets = [0, 64], sizes = [8, 8], strides = [1, 1]} : vector<8x160xf32> to vector<8x8xf32>
    %27 = arith.mulf %26, %4 : vector<8x8xf32>
    %28 = vector.extract_strided_slice %3 {offsets = [0, 96], sizes = [8, 8], strides = [1, 1]} : vector<8x160xf32> to vector<8x8xf32>
    %29 = arith.mulf %28, %5 : vector<8x8xf32>
    %30 = arith.addf %27, %29 : vector<8x8xf32>
    %31 = vector.extract_strided_slice %3 {offsets = [0, 72], sizes = [8, 8], strides = [1, 1]} : vector<8x160xf32> to vector<8x8xf32>
    %32 = arith.mulf %31, %4 : vector<8x8xf32>
    %33 = vector.extract_strided_slice %3 {offsets = [0, 104], sizes = [8, 8], strides = [1, 1]} : vector<8x160xf32> to vector<8x8xf32>
    %34 = arith.mulf %33, %5 : vector<8x8xf32>
    %35 = arith.addf %32, %34 : vector<8x8xf32>
    %36 = vector.extract_strided_slice %3 {offsets = [0, 80], sizes = [8, 8], strides = [1, 1]} : vector<8x160xf32> to vector<8x8xf32>
    %37 = arith.mulf %36, %4 : vector<8x8xf32>
    %38 = vector.extract_strided_slice %3 {offsets = [0, 112], sizes = [8, 8], strides = [1, 1]} : vector<8x160xf32> to vector<8x8xf32>
    %39 = arith.mulf %38, %5 : vector<8x8xf32>
    %40 = arith.addf %37, %39 : vector<8x8xf32>
    %41 = vector.extract_strided_slice %3 {offsets = [0, 88], sizes = [8, 8], strides = [1, 1]} : vector<8x160xf32> to vector<8x8xf32>
    %42 = arith.mulf %41, %4 : vector<8x8xf32>
    %43 = vector.extract_strided_slice %3 {offsets = [0, 120], sizes = [8, 8], strides = [1, 1]} : vector<8x160xf32> to vector<8x8xf32>
    %44 = arith.mulf %43, %5 : vector<8x8xf32>
    %45 = arith.addf %42, %44 : vector<8x8xf32>
    %46 = vector.extract_strided_slice %3 {offsets = [0, 128], sizes = [8, 8], strides = [1, 1]} : vector<8x160xf32> to vector<8x8xf32>
    %47 = vector.extract_strided_slice %3 {offsets = [0, 136], sizes = [8, 8], strides = [1, 1]} : vector<8x160xf32> to vector<8x8xf32>
    %48 = vector.extract_strided_slice %3 {offsets = [0, 144], sizes = [8, 8], strides = [1, 1]} : vector<8x160xf32> to vector<8x8xf32>
    %49 = vector.extract_strided_slice %3 {offsets = [0, 152], sizes = [8, 8], strides = [1, 1]} : vector<8x160xf32> to vector<8x8xf32>
    %50 = arith.mulf %10, %30 : vector<8x8xf32>
    %cst_8 = arith.constant dense<0.000000e+00> : vector<8xf32>
    %51 = vector.multi_reduction <add>, %50, %cst_8 [1] : vector<8x8xf32> to vector<8xf32>
    %52 = vector.shape_cast %51 : vector<8xf32> to vector<8x1xf32>
    %cst_9 = arith.constant 0.353553385 : f32
    %53 = vector.broadcast %cst_9 : f32 to vector<8x1xf32>
    %54 = arith.mulf %52, %53 : vector<8x1xf32>
    %55 = arith.mulf %10, %35 : vector<8x8xf32>
    %cst_10 = arith.constant dense<0.000000e+00> : vector<8xf32>
    %56 = vector.multi_reduction <add>, %55, %cst_10 [1] : vector<8x8xf32> to vector<8xf32>
    %57 = vector.shape_cast %56 : vector<8xf32> to vector<8x1xf32>
    %cst_11 = arith.constant 0.353553385 : f32
    %58 = vector.broadcast %cst_11 : f32 to vector<8x1xf32>
    %59 = arith.mulf %57, %58 : vector<8x1xf32>
    %60 = arith.mulf %10, %40 : vector<8x8xf32>
    %cst_12 = arith.constant dense<0.000000e+00> : vector<8xf32>
    %61 = vector.multi_reduction <add>, %60, %cst_12 [1] : vector<8x8xf32> to vector<8xf32>
    %62 = vector.shape_cast %61 : vector<8xf32> to vector<8x1xf32>
    %cst_13 = arith.constant 0.353553385 : f32
    %63 = vector.broadcast %cst_13 : f32 to vector<8x1xf32>
    %64 = arith.mulf %62, %63 : vector<8x1xf32>
    %65 = arith.mulf %10, %45 : vector<8x8xf32>
    %cst_14 = arith.constant dense<0.000000e+00> : vector<8xf32>
    %66 = vector.multi_reduction <add>, %65, %cst_14 [1] : vector<8x8xf32> to vector<8xf32>
    %67 = vector.shape_cast %66 : vector<8xf32> to vector<8x1xf32>
    %cst_15 = arith.constant 0.353553385 : f32
    %68 = vector.broadcast %cst_15 : f32 to vector<8x1xf32>
    %69 = arith.mulf %67, %68 : vector<8x1xf32>
    %70 = arith.maximumf %54, %59 : vector<8x1xf32>
    %71 = arith.maximumf %70, %64 : vector<8x1xf32>
    %72 = arith.maximumf %71, %69 : vector<8x1xf32>
    %73 = arith.subf %54, %72 : vector<8x1xf32>
    %74 = math.exp %73 : vector<8x1xf32>
    %75 = arith.subf %59, %72 : vector<8x1xf32>
    %76 = math.exp %75 : vector<8x1xf32>
    %77 = arith.subf %64, %72 : vector<8x1xf32>
    %78 = math.exp %77 : vector<8x1xf32>
    %79 = arith.subf %69, %72 : vector<8x1xf32>
    %80 = math.exp %79 : vector<8x1xf32>
    %81 = arith.addf %74, %76 : vector<8x1xf32>
    %82 = arith.addf %81, %78 : vector<8x1xf32>
    %83 = arith.addf %82, %80 : vector<8x1xf32>
    %84 = tpu.reciprocal %83 {approx = true} : vector<8x1xf32> -> vector<8x1xf32>
    %85 = arith.mulf %74, %84 : vector<8x1xf32>
    %86 = vector.broadcast %85 : vector<8x1xf32> to vector<8x8xf32>
    %87 = arith.mulf %86, %46 : vector<8x8xf32>
    %88 = arith.mulf %76, %84 : vector<8x1xf32>
    %89 = vector.broadcast %88 : vector<8x1xf32> to vector<8x8xf32>
    %90 = arith.mulf %89, %47 : vector<8x8xf32>
    %91 = arith.addf %87, %90 : vector<8x8xf32>
    %92 = arith.mulf %78, %84 : vector<8x1xf32>
    %93 = vector.broadcast %92 : vector<8x1xf32> to vector<8x8xf32>
    %94 = arith.mulf %93, %48 : vector<8x8xf32>
    %95 = arith.addf %91, %94 : vector<8x8xf32>
    %96 = arith.mulf %80, %84 : vector<8x1xf32>
    %97 = vector.broadcast %96 : vector<8x1xf32> to vector<8x8xf32>
    %98 = arith.mulf %97, %49 : vector<8x8xf32>
    %99 = arith.addf %95, %98 : vector<8x8xf32>
    %100 = arith.mulf %15, %30 : vector<8x8xf32>
    %cst_16 = arith.constant dense<0.000000e+00> : vector<8xf32>
    %101 = vector.multi_reduction <add>, %100, %cst_16 [1] : vector<8x8xf32> to vector<8xf32>
    %102 = vector.shape_cast %101 : vector<8xf32> to vector<8x1xf32>
    %cst_17 = arith.constant 0.353553385 : f32
    %103 = vector.broadcast %cst_17 : f32 to vector<8x1xf32>
    %104 = arith.mulf %102, %103 : vector<8x1xf32>
    %105 = arith.mulf %15, %35 : vector<8x8xf32>
    %cst_18 = arith.constant dense<0.000000e+00> : vector<8xf32>
    %106 = vector.multi_reduction <add>, %105, %cst_18 [1] : vector<8x8xf32> to vector<8xf32>
    %107 = vector.shape_cast %106 : vector<8xf32> to vector<8x1xf32>
    %cst_19 = arith.constant 0.353553385 : f32
    %108 = vector.broadcast %cst_19 : f32 to vector<8x1xf32>
    %109 = arith.mulf %107, %108 : vector<8x1xf32>
    %110 = arith.mulf %15, %40 : vector<8x8xf32>
    %cst_20 = arith.constant dense<0.000000e+00> : vector<8xf32>
    %111 = vector.multi_reduction <add>, %110, %cst_20 [1] : vector<8x8xf32> to vector<8xf32>
    %112 = vector.shape_cast %111 : vector<8xf32> to vector<8x1xf32>
    %cst_21 = arith.constant 0.353553385 : f32
    %113 = vector.broadcast %cst_21 : f32 to vector<8x1xf32>
    %114 = arith.mulf %112, %113 : vector<8x1xf32>
    %115 = arith.mulf %15, %45 : vector<8x8xf32>
    %cst_22 = arith.constant dense<0.000000e+00> : vector<8xf32>
    %116 = vector.multi_reduction <add>, %115, %cst_22 [1] : vector<8x8xf32> to vector<8xf32>
    %117 = vector.shape_cast %116 : vector<8xf32> to vector<8x1xf32>
    %cst_23 = arith.constant 0.353553385 : f32
    %118 = vector.broadcast %cst_23 : f32 to vector<8x1xf32>
    %119 = arith.mulf %117, %118 : vector<8x1xf32>
    %120 = arith.maximumf %104, %109 : vector<8x1xf32>
    %121 = arith.maximumf %120, %114 : vector<8x1xf32>
    %122 = arith.maximumf %121, %119 : vector<8x1xf32>
    %123 = arith.subf %104, %122 : vector<8x1xf32>
    %124 = math.exp %123 : vector<8x1xf32>
    %125 = arith.subf %109, %122 : vector<8x1xf32>
    %126 = math.exp %125 : vector<8x1xf32>
    %127 = arith.subf %114, %122 : vector<8x1xf32>
    %128 = math.exp %127 : vector<8x1xf32>
    %129 = arith.subf %119, %122 : vector<8x1xf32>
    %130 = math.exp %129 : vector<8x1xf32>
    %131 = arith.addf %124, %126 : vector<8x1xf32>
    %132 = arith.addf %131, %128 : vector<8x1xf32>
    %133 = arith.addf %132, %130 : vector<8x1xf32>
    %134 = tpu.reciprocal %133 {approx = true} : vector<8x1xf32> -> vector<8x1xf32>
    %135 = arith.mulf %124, %134 : vector<8x1xf32>
    %136 = vector.broadcast %135 : vector<8x1xf32> to vector<8x8xf32>
    %137 = arith.mulf %136, %46 : vector<8x8xf32>
    %138 = arith.mulf %126, %134 : vector<8x1xf32>
    %139 = vector.broadcast %138 : vector<8x1xf32> to vector<8x8xf32>
    %140 = arith.mulf %139, %47 : vector<8x8xf32>
    %141 = arith.addf %137, %140 : vector<8x8xf32>
    %142 = arith.mulf %128, %134 : vector<8x1xf32>
    %143 = vector.broadcast %142 : vector<8x1xf32> to vector<8x8xf32>
    %144 = arith.mulf %143, %48 : vector<8x8xf32>
    %145 = arith.addf %141, %144 : vector<8x8xf32>
    %146 = arith.mulf %130, %134 : vector<8x1xf32>
    %147 = vector.broadcast %146 : vector<8x1xf32> to vector<8x8xf32>
    %148 = arith.mulf %147, %49 : vector<8x8xf32>
    %149 = arith.addf %145, %148 : vector<8x8xf32>
    %150 = arith.mulf %20, %30 : vector<8x8xf32>
    %cst_24 = arith.constant dense<0.000000e+00> : vector<8xf32>
    %151 = vector.multi_reduction <add>, %150, %cst_24 [1] : vector<8x8xf32> to vector<8xf32>
    %152 = vector.shape_cast %151 : vector<8xf32> to vector<8x1xf32>
    %cst_25 = arith.constant 0.353553385 : f32
    %153 = vector.broadcast %cst_25 : f32 to vector<8x1xf32>
    %154 = arith.mulf %152, %153 : vector<8x1xf32>
    %155 = arith.mulf %20, %35 : vector<8x8xf32>
    %cst_26 = arith.constant dense<0.000000e+00> : vector<8xf32>
    %156 = vector.multi_reduction <add>, %155, %cst_26 [1] : vector<8x8xf32> to vector<8xf32>
    %157 = vector.shape_cast %156 : vector<8xf32> to vector<8x1xf32>
    %cst_27 = arith.constant 0.353553385 : f32
    %158 = vector.broadcast %cst_27 : f32 to vector<8x1xf32>
    %159 = arith.mulf %157, %158 : vector<8x1xf32>
    %160 = arith.mulf %20, %40 : vector<8x8xf32>
    %cst_28 = arith.constant dense<0.000000e+00> : vector<8xf32>
    %161 = vector.multi_reduction <add>, %160, %cst_28 [1] : vector<8x8xf32> to vector<8xf32>
    %162 = vector.shape_cast %161 : vector<8xf32> to vector<8x1xf32>
    %cst_29 = arith.constant 0.353553385 : f32
    %163 = vector.broadcast %cst_29 : f32 to vector<8x1xf32>
    %164 = arith.mulf %162, %163 : vector<8x1xf32>
    %165 = arith.mulf %20, %45 : vector<8x8xf32>
    %cst_30 = arith.constant dense<0.000000e+00> : vector<8xf32>
    %166 = vector.multi_reduction <add>, %165, %cst_30 [1] : vector<8x8xf32> to vector<8xf32>
    %167 = vector.shape_cast %166 : vector<8xf32> to vector<8x1xf32>
    %cst_31 = arith.constant 0.353553385 : f32
    %168 = vector.broadcast %cst_31 : f32 to vector<8x1xf32>
    %169 = arith.mulf %167, %168 : vector<8x1xf32>
    %170 = arith.maximumf %154, %159 : vector<8x1xf32>
    %171 = arith.maximumf %170, %164 : vector<8x1xf32>
    %172 = arith.maximumf %171, %169 : vector<8x1xf32>
    %173 = arith.subf %154, %172 : vector<8x1xf32>
    %174 = math.exp %173 : vector<8x1xf32>
    %175 = arith.subf %159, %172 : vector<8x1xf32>
    %176 = math.exp %175 : vector<8x1xf32>
    %177 = arith.subf %164, %172 : vector<8x1xf32>
    %178 = math.exp %177 : vector<8x1xf32>
    %179 = arith.subf %169, %172 : vector<8x1xf32>
    %180 = math.exp %179 : vector<8x1xf32>
    %181 = arith.addf %174, %176 : vector<8x1xf32>
    %182 = arith.addf %181, %178 : vector<8x1xf32>
    %183 = arith.addf %182, %180 : vector<8x1xf32>
    %184 = tpu.reciprocal %183 {approx = true} : vector<8x1xf32> -> vector<8x1xf32>
    %185 = arith.mulf %174, %184 : vector<8x1xf32>
    %186 = vector.broadcast %185 : vector<8x1xf32> to vector<8x8xf32>
    %187 = arith.mulf %186, %46 : vector<8x8xf32>
    %188 = arith.mulf %176, %184 : vector<8x1xf32>
    %189 = vector.broadcast %188 : vector<8x1xf32> to vector<8x8xf32>
    %190 = arith.mulf %189, %47 : vector<8x8xf32>
    %191 = arith.addf %187, %190 : vector<8x8xf32>
    %192 = arith.mulf %178, %184 : vector<8x1xf32>
    %193 = vector.broadcast %192 : vector<8x1xf32> to vector<8x8xf32>
    %194 = arith.mulf %193, %48 : vector<8x8xf32>
    %195 = arith.addf %191, %194 : vector<8x8xf32>
    %196 = arith.mulf %180, %184 : vector<8x1xf32>
    %197 = vector.broadcast %196 : vector<8x1xf32> to vector<8x8xf32>
    %198 = arith.mulf %197, %49 : vector<8x8xf32>
    %199 = arith.addf %195, %198 : vector<8x8xf32>
    %200 = arith.mulf %25, %30 : vector<8x8xf32>
    %cst_32 = arith.constant dense<0.000000e+00> : vector<8xf32>
    %201 = vector.multi_reduction <add>, %200, %cst_32 [1] : vector<8x8xf32> to vector<8xf32>
    %202 = vector.shape_cast %201 : vector<8xf32> to vector<8x1xf32>
    %cst_33 = arith.constant 0.353553385 : f32
    %203 = vector.broadcast %cst_33 : f32 to vector<8x1xf32>
    %204 = arith.mulf %202, %203 : vector<8x1xf32>
    %205 = arith.mulf %25, %35 : vector<8x8xf32>
    %cst_34 = arith.constant dense<0.000000e+00> : vector<8xf32>
    %206 = vector.multi_reduction <add>, %205, %cst_34 [1] : vector<8x8xf32> to vector<8xf32>
    %207 = vector.shape_cast %206 : vector<8xf32> to vector<8x1xf32>
    %cst_35 = arith.constant 0.353553385 : f32
    %208 = vector.broadcast %cst_35 : f32 to vector<8x1xf32>
    %209 = arith.mulf %207, %208 : vector<8x1xf32>
    %210 = arith.mulf %25, %40 : vector<8x8xf32>
    %cst_36 = arith.constant dense<0.000000e+00> : vector<8xf32>
    %211 = vector.multi_reduction <add>, %210, %cst_36 [1] : vector<8x8xf32> to vector<8xf32>
    %212 = vector.shape_cast %211 : vector<8xf32> to vector<8x1xf32>
    %cst_37 = arith.constant 0.353553385 : f32
    %213 = vector.broadcast %cst_37 : f32 to vector<8x1xf32>
    %214 = arith.mulf %212, %213 : vector<8x1xf32>
    %215 = arith.mulf %25, %45 : vector<8x8xf32>
    %cst_38 = arith.constant dense<0.000000e+00> : vector<8xf32>
    %216 = vector.multi_reduction <add>, %215, %cst_38 [1] : vector<8x8xf32> to vector<8xf32>
    %217 = vector.shape_cast %216 : vector<8xf32> to vector<8x1xf32>
    %cst_39 = arith.constant 0.353553385 : f32
    %218 = vector.broadcast %cst_39 : f32 to vector<8x1xf32>
    %219 = arith.mulf %217, %218 : vector<8x1xf32>
    %220 = arith.maximumf %204, %209 : vector<8x1xf32>
    %221 = arith.maximumf %220, %214 : vector<8x1xf32>
    %222 = arith.maximumf %221, %219 : vector<8x1xf32>
    %223 = arith.subf %204, %222 : vector<8x1xf32>
    %224 = math.exp %223 : vector<8x1xf32>
    %225 = arith.subf %209, %222 : vector<8x1xf32>
    %226 = math.exp %225 : vector<8x1xf32>
    %227 = arith.subf %214, %222 : vector<8x1xf32>
    %228 = math.exp %227 : vector<8x1xf32>
    %229 = arith.subf %219, %222 : vector<8x1xf32>
    %230 = math.exp %229 : vector<8x1xf32>
    %231 = arith.addf %224, %226 : vector<8x1xf32>
    %232 = arith.addf %231, %228 : vector<8x1xf32>
    %233 = arith.addf %232, %230 : vector<8x1xf32>
    %234 = tpu.reciprocal %233 {approx = true} : vector<8x1xf32> -> vector<8x1xf32>
    %235 = arith.mulf %224, %234 : vector<8x1xf32>
    %236 = vector.broadcast %235 : vector<8x1xf32> to vector<8x8xf32>
    %237 = arith.mulf %236, %46 : vector<8x8xf32>
    %238 = arith.mulf %226, %234 : vector<8x1xf32>
    %239 = vector.broadcast %238 : vector<8x1xf32> to vector<8x8xf32>
    %240 = arith.mulf %239, %47 : vector<8x8xf32>
    %241 = arith.addf %237, %240 : vector<8x8xf32>
    %242 = arith.mulf %228, %234 : vector<8x1xf32>
    %243 = vector.broadcast %242 : vector<8x1xf32> to vector<8x8xf32>
    %244 = arith.mulf %243, %48 : vector<8x8xf32>
    %245 = arith.addf %241, %244 : vector<8x8xf32>
    %246 = arith.mulf %230, %234 : vector<8x1xf32>
    %247 = vector.broadcast %246 : vector<8x1xf32> to vector<8x8xf32>
    %248 = arith.mulf %247, %49 : vector<8x8xf32>
    %249 = arith.addf %245, %248 : vector<8x8xf32>
    %250 = tpu.concatenate %99, %149, %199, %249 in 1 : vector<8x8xf32>, vector<8x8xf32>, vector<8x8xf32>, vector<8x8xf32> -> vector<8x32xf32>
    %c0_40 = arith.constant 0 : index
    %c0_41 = arith.constant 0 : index
    %c0_42 = arith.constant 0 : index
    %251 = vector.load %arg6[%c0_40, %c0_41, %c0_42] : memref<1x8x32xf32, #tpu.memory_space<vmem>>, vector<1x8x32xf32>
    %252 = vector.shape_cast %251 : vector<1x8x32xf32> to vector<8x32xf32>
    %253 = vector.shape_cast %250 : vector<8x32xf32> to vector<1x8x32xf32>
    tpu.vector_store %arg6[%c0_40, %c0_41, %c0_42], %253 {strides = array<i32>} : memref<1x8x32xf32, #tpu.memory_space<vmem>>, vector<1x8x32xf32>,
    return
  }
  func.func @transform_0(%arg0: i32, %arg1: i32) -> (i32, i32, i32) {
    %c0_i32 = arith.constant 0 : i32
    %c0_i32_0 = arith.constant 0 : i32
    return %arg0, %arg1, %c0_i32 : i32, i32, i32
  }
  func.func @transform_1(%arg0: i32, %arg1: i32) -> (i32, i32) {
    %c0_i32 = arith.constant 0 : i32
    %c0_i32_0 = arith.constant 0 : i32
    %c0_i32_1 = arith.constant 0 : i32
    return %c0_i32, %c0_i32_0 : i32, i32
  }
  func.func @transform_2(%arg0: i32, %arg1: i32) -> (i32, i32) {
    %c0_i32 = arith.constant 0 : i32
    %c0_i32_0 = arith.constant 0 : i32
    return %arg1, %c0_i32 : i32, i32
  }
  func.func @transform_3(%arg0: i32, %arg1: i32) -> (i32, i32) {
    %c0_i32 = arith.constant 0 : i32
    %c0_i32_0 = arith.constant 0 : i32
    return %arg1, %c0_i32 : i32, i32
  }
  func.func @transform_4(%arg0: i32, %arg1: i32) -> (i32, i32, i32) {
    %c0_i32 = arith.constant 0 : i32
    %c0_i32_0 = arith.constant 0 : i32
    return %arg0, %arg1, %c0_i32 : i32, i32, i32
  }
}

</mosaic_0001>

<llo_original>
// kernel: tpu_custom_call.1
$region0: #{tpu_custom_call.1}
  #allocation0 [shape = 'u32[]', space=smem, size = 0x4, offset = 0x4, fixed_abs, tag = 'smem constant byte address 0x4 - core index']
  #allocation1 [shape = 'u32[144,128]{1,0:T(1,128)}', space=vmem, size = 0x12000, scoped, tag = 'internal scratch']
  %s0 = inlined_call_operand.hbm [shape: bf16[2,8,32], index: 0, kind: input, shape index: {}]
  %s1 = inlined_call_operand.hbm [shape: bf16[32,160], index: 1, kind: input, shape index: {}]
  %s2 = inlined_call_operand.hbm [shape: f32[8,8], index: 2, kind: input, shape index: {}]
  %s3 = inlined_call_operand.hbm [shape: f32[8,8], index: 3, kind: input, shape index: {}]
  %s4 = inlined_call_operand.hbm [shape: f32[2,8,32], index: 4, kind: output, shape index: {}]
  %s5 = sld [smem:[#allocation0]]
  $region65: #{tpu_custom_call.1} parent=0
    _
  %s7 = ssub.s32 1, %s5
  %s8 = scalar_select 0, %s7, %s5
  $region1: #{tpu_custom_call.1} parent=0
    #allocation2 [shape = 'u8[4096]{0}', space=vmem, size = 0x1000, scoped, tag = 'input window, operand 0']
    #allocation3 [shape = 's32[2]{0}', space=sflag, size = 0x8, scoped, tag = 'scoped memory for tpu_custom_call.1']
    #allocation4 [shape = 's32[2]{0}', space=sflag, size = 0x8, scoped, tag = 'scoped memory for tpu_custom_call.1']
    #allocation5 [shape = 'u8[16384]{0}', space=vmem, size = 0x4000, scoped, tag = 'input window, operand 1, single buffered']
    #allocation6 [shape = 's32[1]{0}', space=sflag, size = 0x4, scoped, tag = 'scoped memory for tpu_custom_call.1']
    #allocation7 [shape = 'u8[4096]{0}', space=vmem, size = 0x1000, scoped, tag = 'input window, operand 2, single buffered']
    #allocation8 [shape = 'u8[4096]{0}', space=vmem, size = 0x1000, scoped, tag = 'input window, operand 3, single buffered']
    #allocation9 [shape = 's32[1]{0}', space=sflag, size = 0x4, scoped, tag = 'scoped memory for tpu_custom_call.1']
    #allocation10 [shape = 'u8[8192]{0}', space=vmem, size = 0x2000, scoped, tag = 'output window, operand 0']
    %9 = vsyncpa [#allocation3], 0
    %s10 = scalar_lea.sflag [#allocation3], 1
    %11 = vsyncpa %s10, 0
    %12 = vsyncpa [#allocation6], 0
    %13 = vsyncpa [#allocation9], 0
    %14 = vsyncpa [#allocation4], 0
    %s15 = scalar_lea.sflag [#allocation4], 1
    %16 = vsyncpa %s15, 0
    loop: start=0, step=1, limit=4
    $region2: #{tpu_custom_call.1} parent=1 // loop_pre_header
      _
    $region3: #{tpu_custom_call.1} parent=1 // loop_header
      %s18 = sphi 0, %s22
      %p19 = scmp.ge.s32.totalorder %s18, 4
      %s25 = sphi 0, %s37
      %s26 = sphi 0, %s33
      %s27 = sphi 0, %s25
      %s28 = sphi 0, %s26
      %s29 = sphi 0, %s27
      %s30 = sphi 0, %s28
      %s42 = sphi 0, %s44
      %s45 = sphi 0, %s42
      %s46 = sphi 0, %s45
      %s62 = sphi 0, %s46
      %s66 = sphi 0, %s66
      %s68 = sphi 0, %s66
      %s69 = sphi 0, %s68
      %s83 = sphi 0, %s69
      %s89 = sphi 0, %s91
      %s92 = sphi 0, %s89
      %s93 = sphi 0, %s92
      %s109 = sphi 0, %s93
      %s115 = sphi 0, %s117
      %s118 = sphi 0, %s115
      %s119 = sphi 0, %s118
      %s135 = sphi 0, %s119
      %s143 = sphi 0, %s145
      %s146 = sphi 0, %s143
      %s147 = sphi 0, %s146
      %s163 = sphi 0, %s147
    $region4: #{tpu_custom_call.1} parent=1 // loop_header_branch
      %21 = sbr.rel (%p19) target = $region8
    $region5: #{tpu_custom_call.1} parent=1 // loop_body
      %s23 = ssub.s32 %s18, 1
      %s24 = ssub.s32 %s18, 2
      %s31 = sadd.s32 1, %s26
      %p32 = scmp.ge.s32.totalorder %s31, 1
      %s33 = scalar_select %p32, 0, %s31
      %s34 = sadd.s32 1, %s25
      %s35 = scalar_select %p32, %s34, %s25
      %p36 = scmp.ge.s32.totalorder %s35, 2
      %s37 = scalar_select %p36, 0, %s35
      %s38 = ssub.s32 %s25, %s37
      %s39 = ssub.s32 %s26, %s33
      %s40 = sor.u32 %s38, %s39
      %p41 = scmp.eq.s32.totalorder %s40, 0
      %s43 = sadd.s32 %s42, 1
      %s44 = scalar_select %p41, %s42, %s43
      %p47 = pneg %p41
      %p48 = scmp.eq.s32.totalorder %s18, 1
      %p49 = por %p47, %p48
      %p50 = scmp.ne.s32.totalorder %s42, %s45
      %p51 = scmp.eq.s32.totalorder %s18, 0
      %p52 = por %p50, %p51
      %p53 = scmp.ne.s32.totalorder %s42, %s45
      %p54 = scmp.eq.s32.totalorder %s23, 1
      %p55 = por %p53, %p54
      %p56 = scmp.ne.s32.totalorder %s45, %s46
      %p57 = scmp.eq.s32.totalorder %s23, 0
      %p58 = por %p56, %p57
      %p59 = scmp.ne.s32.totalorder %s45, %s46
      %p60 = scmp.eq.s32.totalorder %s24, 1
      %p61 = por %p59, %p60
      %p63 = scmp.ne.s32.totalorder %s46, %s62
      %p64 = scmp.eq.s32.totalorder %s24, 0
      %p65 = por %p63, %p64
      %s67 = sadd.s32 %s66, 1
      %p70 = scmp.eq.s32.totalorder %s18, 1
      %p71 = scmp.ne.s32.totalorder %s66, %s68
      %p72 = scmp.eq.s32.totalorder %s18, 0
      %p73 = por %p71, %p72
      %p74 = scmp.ne.s32.totalorder %s66, %s68
      %p75 = scmp.eq.s32.totalorder %s23, 1
      %p76 = por %p74, %p75
      %p77 = scmp.ne.s32.totalorder %s68, %s69
      %p78 = scmp.eq.s32.totalorder %s23, 0
      %p79 = por %p77, %p78
      %p80 = scmp.ne.s32.totalorder %s68, %s69
      %p81 = scmp.eq.s32.totalorder %s24, 1
      %p82 = por %p80, %p81
      %p84 = scmp.ne.s32.totalorder %s69, %s83
      %p85 = scmp.eq.s32.totalorder %s24, 0
      %p86 = por %p84, %p85
      %s87 = ssub.s32 %s26, %s33
      %p88 = scmp.eq.s32.totalorder %s87, 0
      %s90 = sadd.s32 %s89, 1
      %s91 = scalar_select %p88, %s89, %s90
      %p94 = pneg %p88
      %p95 = scmp.eq.s32.totalorder %s18, 1
      %p96 = por %p94, %p95
      %p97 = scmp.ne.s32.totalorder %s89, %s92
      %p98 = scmp.eq.s32.totalorder %s18, 0
      %p99 = por %p97, %p98
      %p100 = scmp.ne.s32.totalorder %s89, %s92
      %p101 = scmp.eq.s32.totalorder %s23, 1
      %p102 = por %p100, %p101
      %p103 = scmp.ne.s32.totalorder %s92, %s93
      %p104 = scmp.eq.s32.totalorder %s23, 0
      %p105 = por %p103, %p104
      %p106 = scmp.ne.s32.totalorder %s92, %s93
      %p107 = scmp.eq.s32.totalorder %s24, 1
      %p108 = por %p106, %p107
      %p110 = scmp.ne.s32.totalorder %s93, %s109
      %p111 = scmp.eq.s32.totalorder %s24, 0
      %p112 = por %p110, %p111
      %s113 = ssub.s32 %s26, %s33
      %p114 = scmp.eq.s32.totalorder %s113, 0
      %s116 = sadd.s32 %s115, 1
      %s117 = scalar_select %p114, %s115, %s116
      %p120 = pneg %p114
      %p121 = scmp.eq.s32.totalorder %s18, 1
      %p122 = por %p120, %p121
      %p123 = scmp.ne.s32.totalorder %s115, %s118
      %p124 = scmp.eq.s32.totalorder %s18, 0
      %p125 = por %p123, %p124
      %p126 = scmp.ne.s32.totalorder %s115, %s118
      %p127 = scmp.eq.s32.totalorder %s23, 1
      %p128 = por %p126, %p127
      %p129 = scmp.ne.s32.totalorder %s118, %s119
      %p130 = scmp.eq.s32.totalorder %s23, 0
      %p131 = por %p129, %p130
      %p132 = scmp.ne.s32.totalorder %s118, %s119
      %p133 = scmp.eq.s32.totalorder %s24, 1
      %p134 = por %p132, %p133
      %p136 = scmp.ne.s32.totalorder %s119, %s135
      %p137 = scmp.eq.s32.totalorder %s24, 0
      %p138 = por %p136, %p137
      %s139 = ssub.s32 %s25, %s37
      %s140 = ssub.s32 %s26, %s33
      %s141 = sor.u32 %s139, %s140
      %p142 = scmp.eq.s32.totalorder %s141, 0
      %s144 = sadd.s32 %s143, 1
      %s145 = scalar_select %p142, %s143, %s144
      %p148 = pneg %p142
      %p149 = scmp.eq.s32.totalorder %s18, 1
      %p150 = por %p148, %p149
      %p151 = scmp.ne.s32.totalorder %s143, %s146
      %p152 = scmp.eq.s32.totalorder %s18, 0
      %p153 = por %p151, %p152
      %p154 = scmp.ne.s32.totalorder %s143, %s146
      %p155 = scmp.eq.s32.totalorder %s23, 1
      %p156 = por %p154, %p155
      %p157 = scmp.ne.s32.totalorder %s146, %s147
      %p158 = scmp.eq.s32.totalorder %s23, 0
      %p159 = por %p157, %p158
      %p160 = scmp.ne.s32.totalorder %s146, %s147
      %p161 = scmp.eq.s32.totalorder %s24, 1
      %p162 = por %p160, %p161
      %p164 = scmp.ne.s32.totalorder %s147, %s163
      %p165 = scmp.eq.s32.totalorder %s24, 0
      %p166 = por %p164, %p165
      %p167 = scmp.le.s32.totalorder 1, %s18
      %p168 = scmp.lt.s32.totalorder %s18, 3
      %p169 = pnand %p167, %p168
      %p170 = pneg %p169
      // Predicated region
      $region9: #{tpu_custom_call.1} parent=5 // pred_check
        _
      $region10: #{tpu_custom_call.1} parent=5 // pred_check_branch
        %172 = sbr.rel (%p169) target = $region12
      $region11: #{tpu_custom_call.1} parent=5 // pred_region
        %s173 = ssub.s32 %s18, 1
        // Predicated region
        $region13: #{tpu_custom_call.1} parent=11 // pred_check
          %p174 = pneg %p79
        $region14: #{tpu_custom_call.1} parent=11 // pred_check_branch
          %176 = sbr.rel (%p174) target = $region16
        $region15: #{tpu_custom_call.1} parent=11 // pred_region
          %s178 = ssub.s32 512, 512
          %179 = vsyncadd [#allocation6], %s178
          %s180 = sshll.u32 [#allocation5], 4
          %s181 = int_to_ptr.vmem [resolvable:$true] %s180
          %186 = dma.hbm_to_vmem [thread:$0]  %s1, 512, %s181, [#allocation6], 128, 128, 8
        $region16: #{tpu_custom_call.1} parent=11 // pred_fallthru
          _
        // Predicated region
        $region17: #{tpu_custom_call.1} parent=11 // pred_check
          %p187 = pneg %p105
        $region18: #{tpu_custom_call.1} parent=11 // pred_check_branch
          %189 = sbr.rel (%p187) target = $region20
        $region19: #{tpu_custom_call.1} parent=11 // pred_region
          %s191 = ssub.s32 128, 128
          %192 = vsyncadd [#allocation6], %s191
          %s193 = smul.addr %s28, 128
          %s194 = scalar_lea.hbm %s2, %s193
          %s196 = sshll.u32 [#allocation7], 4
          %s197 = int_to_ptr.vmem [resolvable:$true] %s196
          %199 = dma.hbm_to_vmem [thread:$0]  %s194, 128, %s197, [#allocation6]
        $region20: #{tpu_custom_call.1} parent=11 // pred_fallthru
          _
        // Predicated region
        $region21: #{tpu_custom_call.1} parent=11 // pred_check
          %p200 = pneg %p131
        $region22: #{tpu_custom_call.1} parent=11 // pred_check_branch
          %202 = sbr.rel (%p200) target = $region24
        $region23: #{tpu_custom_call.1} parent=11 // pred_region
          %s204 = ssub.s32 128, 128
          %205 = vsyncadd [#allocation9], %s204
          %s206 = smul.addr %s28, 128
          %s207 = scalar_lea.hbm %s3, %s206
          %s209 = sshll.u32 [#allocation8], 4
          %s210 = int_to_ptr.vmem [resolvable:$true] %s209
          %212 = dma.hbm_to_vmem [thread:$0]  %s207, 128, %s210, [#allocation9]
        $region24: #{tpu_custom_call.1} parent=11 // pred_fallthru
          _
      $region12: #{tpu_custom_call.1} parent=5 // pred_fallthru
        _
      %p213 = scmp.lt.s32.totalorder %s18, 2
      // Predicated region
      $region25: #{tpu_custom_call.1} parent=5 // pred_check
        %p214 = pneg %p213
      $region26: #{tpu_custom_call.1} parent=5 // pred_check_branch
        %216 = sbr.rel (%p214) target = $region28
      $region27: #{tpu_custom_call.1} parent=5 // pred_region
        // Predicated region
        $region29: #{tpu_custom_call.1} parent=27 // pred_check
          %p217 = pneg %p52
        $region30: #{tpu_custom_call.1} parent=27 // pred_check_branch
          %219 = sbr.rel (%p217) target = $region32
        $region31: #{tpu_custom_call.1} parent=27 // pred_region
          %s220 = sand.u32 %s42, 1
          %s221 = scalar_lea.sflag [#allocation3], %s220
          %s222 = sand.u32 %s42, 1
          %s223 = smul.addr %s222, 4
          %s224 = scalar_lea.vmem [#allocation2], %s223
          %s226 = ssub.s32 64, 64
          %227 = vsyncadd %s221, %s226
          %s228 = sadd.s32 %s26, %s25
          %s229 = smul.addr %s228, 64
          %s230 = scalar_lea.hbm %s0, %s229
          %s232 = sshll.u32 %s224, 4
          %s233 = int_to_ptr.vmem [resolvable:$true] %s232
          %235 = dma.hbm_to_vmem [thread:$0]  %s230, 64, %s233, %s221
        $region32: #{tpu_custom_call.1} parent=27 // pred_fallthru
          _
      $region28: #{tpu_custom_call.1} parent=5 // pred_fallthru
        _
      %p236 = scmp.le.s32.totalorder 1, %s18
      %p237 = scmp.lt.s32.totalorder %s18, 3
      %p238 = pnand %p236, %p237
      %p239 = pneg %p238
      // Predicated region
      $region33: #{tpu_custom_call.1} parent=5 // pred_check
        _
      $region34: #{tpu_custom_call.1} parent=5 // pred_check_branch
        %241 = sbr.rel (%p238) target = $region36
      $region35: #{tpu_custom_call.1} parent=5 // pred_region
        %s242 = ssub.s32 %s18, 1
        %s243 = sand.u32 %s45, 1
        %s244 = scalar_lea.sflag [#allocation3], %s243
        %s245 = sand.u32 %s45, 1
        %s246 = smul.addr %s245, 4
        %s247 = scalar_lea.vmem [#allocation2], %s246
        // Predicated region
        $region37: #{tpu_custom_call.1} parent=35 // pred_check
          %p248 = pneg %p58
        $region38: #{tpu_custom_call.1} parent=35 // pred_check_branch
          %250 = sbr.rel (%p248) target = $region40
        $region39: #{tpu_custom_call.1} parent=35 // pred_region
          %251 = dma.done %s244, 64
        $region40: #{tpu_custom_call.1} parent=35 // pred_fallthru
          _
        // Predicated region
        $region41: #{tpu_custom_call.1} parent=35 // pred_check
          %p252 = pneg %p79
        $region42: #{tpu_custom_call.1} parent=35 // pred_check_branch
          %254 = sbr.rel (%p252) target = $region44
        $region43: #{tpu_custom_call.1} parent=35 // pred_region
          %255 = dma.done [#allocation6], 512
        $region44: #{tpu_custom_call.1} parent=35 // pred_fallthru
          _
        // Predicated region
        $region45: #{tpu_custom_call.1} parent=35 // pred_check
          %p256 = pneg %p105
        $region46: #{tpu_custom_call.1} parent=35 // pred_check_branch
          %258 = sbr.rel (%p256) target = $region48
        $region47: #{tpu_custom_call.1} parent=35 // pred_region
          %259 = dma.done [#allocation6], 128
        $region48: #{tpu_custom_call.1} parent=35 // pred_fallthru
          _
        // Predicated region
        $region49: #{tpu_custom_call.1} parent=35 // pred_check
          %p260 = pneg %p131
        $region50: #{tpu_custom_call.1} parent=35 // pred_check_branch
          %262 = sbr.rel (%p260) target = $region52
        $region51: #{tpu_custom_call.1} parent=35 // pred_region
          %263 = dma.done [#allocation9], 128
        $region52: #{tpu_custom_call.1} parent=35 // pred_fallthru
          _
        %s264 = sand.u32 %s45, 1
        %s265 = scalar_lea.sflag [#allocation3], %s264
        %s266 = sand.u32 %s45, 1
        %s267 = smul.addr %s266, 4
        %s268 = scalar_lea.vmem [#allocation2], %s267
        %p269 = pneg %p58
        %p270 = pneg %p55
        %p271 = pneg %p79
        %p272 = pneg %p76
        %p273 = pneg %p105
        %p274 = pneg %p102
        %p275 = pneg %p131
        %p276 = pneg %p128
        %p277 = pneg %p159
        %p278 = pneg %p156
        %s279 = sand.u32 %s146, 1
        %s280 = scalar_lea.sflag [#allocation4], %s279
        %s281 = sand.u32 %s146, 1
        %s282 = smul.addr %s281, 8
        %s283 = scalar_lea.vmem [#allocation10], %s282
        %v285 = vld [vmem:[%s247] sm:$0xf]
        %v286 = vld [vmem:[#allocation5] sm:$0xff]
        %v287 = vld [vmem:[#allocation5 + $0x8] sm:$0xff]
        %v288 = vld [vmem:[#allocation5 + $0x10] sm:$0xff]
        %v289 = vld [vmem:[#allocation5 + $0x18] sm:$0xff]
        %v294 = vunpack.c.l.b16 %v286
        %v295 = vunpack.c.h.b16 %v286
        %v296 = vunpack.c.l.b16 %v287
        %v297 = vunpack.c.h.b16 %v287
        %v298 = vunpack.c.l.b16 %v288
        %v299 = vunpack.c.h.b16 %v288
        %v300 = vunpack.c.l.b16 %v289
        %v301 = vunpack.c.h.b16 %v289
        %v302 = vpack.c.b16 %v296, %v294
        %v303 = vpack.c.b16 %v297, %v295
        %v304 = vpack.c.b16 %v300, %v298
        %v305 = vpack.c.b16 %v301, %v299
        %vm310 = vcmask 261120
        %v312 = vsel %vm310, %v285, 0
        %314 = vmatprep.subr.bf16.mxu0 0
        %315 = vmatpush1.bf16.msra.mxu0 0
        %316 = vmatprep.subr.bf16.mxu0 0
        %317 = vmatpush1.bf16.msra.mxu0 0
        %318 = vmatprep.subr.bf16.mxu0 0
        %319 = vmatpush1.bf16.msra.mxu0 0
        %320 = vmatprep.subr.bf16.mxu0 0
        %321 = vmatpush1.bf16.msra.mxu0 0
        %322 = vmatprep.subr.bf16.mxu0 0
        %323 = vmatpush1.bf16.msra.mxu0 0
        %324 = vmatprep.subr.bf16.mxu0 0
        %325 = vmatpush1.bf16.msra.mxu0 0
        %326 = vmatprep.subr.bf16.mxu0 %v305
        %327 = vmatpush1.bf16.msra.mxu0 %v304
        %328 = vmatprep.subr.bf16.mxu0 %v303
        %329 = vmatpush1.bf16.msra.mxu0 %v302
        %330 = vmatprep.subr.bf16.mxu0 0
        %331 = vmatpush2.bf16.msra.mxu0 0
        %332 = vmatprep.subr.bf16.mxu0 0
        %333 = vmatpush2.bf16.msra.mxu0 0
        %334 = vmatprep.subr.bf16.mxu0 0
        %335 = vmatpush2.bf16.msra.mxu0 0
        %336 = vmatprep.subr.bf16.mxu0 0
        %337 = vmatpush2.bf16.msra.mxu0 0
        %338 = vmatprep.subr.bf16.mxu0 0
        %339 = vmatpush2.bf16.msra.mxu0 0
        %340 = vmatprep.subr.bf16.mxu0 0
        %341 = vmatpush2.bf16.msra.mxu0 0
        %342 = vmatprep.subr.bf16.mxu0 0
        %343 = vmatpush2.bf16.msra.mxu0 0
        %344 = vmatprep.subr.bf16.mxu0 0
        %345 = vmatpush2.bf16.msra.mxu0 0
        %346 = vmatprep.mubr.bf16.mxu0 0
        %347 = vmatmul.mubr.bf16.gmra.mxu0 %v312
        %v348 = vpop.f32.mrf.mxu0
        %v349 = vadd.f32 0.0, %v348
        %v350 = vpop.f32.mrf.mxu0
        %v351 = vadd.f32 0.0, %v350
        %v352 = vpop.f32.mrf.mxu0
        %v353 = vpop.f32.mrf.mxu0
        %354 = vdwg.mxu0
        %v355 = vld [vmem:[#allocation7] sm:$0xff]
        %v356 = vld [vmem:[#allocation8] sm:$0xff]
        %v357 = vmul.f32 %v349, %v355
        %359 = vrot.lane.b32.xlu0 %v356, 32
        %v360 = vpop.permute.xlu0 %359
        %v362 = vmul.f32 %v349, %v360
        %364 = vrot.lane.b32.xlu0 %v362, 96
        %v365 = vpop.permute.xlu0 %364
        %v367 = vadd.f32 %v357, %v365
        %369 = vrot.lane.b32.xlu0 %v355, 8
        %v370 = vpop.permute.xlu0 %369
        %v372 = vmul.f32 %v349, %v370
        %373 = vrot.lane.b32.xlu0 %v356, 40
        %v374 = vpop.permute.xlu0 %373
        %v376 = vmul.f32 %v349, %v374
        %378 = vrot.lane.b32.xlu0 %v376, 96
        %v379 = vpop.permute.xlu0 %378
        %v381 = vadd.f32 %v372, %v379
        %382 = vrot.lane.b32.xlu0 %v355, 16
        %v383 = vpop.permute.xlu0 %382
        %v385 = vmul.f32 %v349, %v383
        %386 = vrot.lane.b32.xlu0 %v356, 48
        %v387 = vpop.permute.xlu0 %386
        %v389 = vmul.f32 %v349, %v387
        %391 = vrot.lane.b32.xlu0 %v389, 96
        %v392 = vpop.permute.xlu0 %391
        %v394 = vadd.f32 %v385, %v392
        %395 = vrot.lane.b32.xlu0 %v355, 24
        %v396 = vpop.permute.xlu0 %395
        %v398 = vmul.f32 %v349, %v396
        %399 = vrot.lane.b32.xlu0 %v356, 56
        %v400 = vpop.permute.xlu0 %399
        %v402 = vmul.f32 %v349, %v400
        %404 = vrot.lane.b32.xlu0 %v402, 96
        %v405 = vpop.permute.xlu0 %404
        %v407 = vadd.f32 %v398, %v405
        %408 = vrot.lane.b32.xlu0 %v355, 64
        %v409 = vpop.permute.xlu0 %408
        %v411 = vmul.f32 %v349, %v409
        %412 = vrot.lane.b32.xlu0 %v356, 96
        %v413 = vpop.permute.xlu0 %412
        %v415 = vmul.f32 %v349, %v413
        %417 = vrot.lane.b32.xlu0 %v415, 96
        %v418 = vpop.permute.xlu0 %417
        %v420 = vadd.f32 %v411, %v418
        %421 = vrot.lane.b32.xlu0 %v355, 72
        %v422 = vpop.permute.xlu0 %421
        %v424 = vmul.f32 %v349, %v422
        %425 = vrot.lane.b32.xlu0 %v356, 104
        %v426 = vpop.permute.xlu0 %425
        %v428 = vmul.f32 %v349, %v426
        %430 = vrot.lane.b32.xlu0 %v428, 96
        %v431 = vpop.permute.xlu0 %430
        %v433 = vadd.f32 %v424, %v431
        %434 = vrot.lane.b32.xlu0 %v355, 80
        %v435 = vpop.permute.xlu0 %434
        %v437 = vmul.f32 %v349, %v435
        %438 = vrot.lane.b32.xlu0 %v356, 112
        %v439 = vpop.permute.xlu0 %438
        %v441 = vmul.f32 %v349, %v439
        %443 = vrot.lane.b32.xlu0 %v441, 96
        %v444 = vpop.permute.xlu0 %443
        %v446 = vadd.f32 %v437, %v444
        %447 = vrot.lane.b32.xlu0 %v355, 88
        %v448 = vpop.permute.xlu0 %447
        %v450 = vmul.f32 %v349, %v448
        %451 = vrot.lane.b32.xlu0 %v356, 120
        %v452 = vpop.permute.xlu0 %451
        %v454 = vmul.f32 %v349, %v452
        %456 = vrot.lane.b32.xlu0 %v454, 96
        %v457 = vpop.permute.xlu0 %456
        %v459 = vadd.f32 %v450, %v457
        %461 = vrot.lane.b32.xlu0 %v420, 64
        %v462 = vpop.permute.xlu0 %461
        %v464 = vmul.f32 %v367, %v462
        %vm465 = vcmask 64512
        %v466 = vsel %vm465, %v464, 0.0
        %467 = vadd.xlane.f32.xlu0 %v466
        %v468 = vpop.xlane.xlu0 %467
        %v469 = vmul.f32 %v468, 0.35355338
        %471 = vrot.lane.b32.xlu0 %v433, 56
        %v472 = vpop.permute.xlu0 %471
        %v474 = vmul.f32 %v367, %v472
        %v475 = vsel %vm465, %v474, 0.0
        %476 = vadd.xlane.f32.xlu0 %v475
        %v477 = vpop.xlane.xlu0 %476
        %v478 = vmul.f32 %v477, 0.35355338
        %480 = vrot.lane.b32.xlu0 %v446, 48
        %v481 = vpop.permute.xlu0 %480
        %v483 = vmul.f32 %v367, %v481
        %v484 = vsel %vm465, %v483, 0.0
        %485 = vadd.xlane.f32.xlu0 %v484
        %v486 = vpop.xlane.xlu0 %485
        %v487 = vmul.f32 %v486, 0.35355338
        %489 = vrot.lane.b32.xlu0 %v459, 40
        %v490 = vpop.permute.xlu0 %489
        %v492 = vmul.f32 %v367, %v490
        %v493 = vsel %vm465, %v492, 0.0
        %494 = vadd.xlane.f32.xlu0 %v493
        %v495 = vpop.xlane.xlu0 %494
        %v496 = vmul.f32 %v495, 0.35355338
        %v497 = vmax.f32 %v469, %v478
        %v498 = vmax.f32 %v497, %v487
        %v499 = vmax.f32 %v498, %v496
        %v500 = vsub.f32 %v469, %v499
        %v501 = vmul.f32 %v500, 1.442695
        %v502 = vpow.pop %v501
        %v503 = vsub.f32 %v478, %v499
        %v504 = vmul.f32 %v503, 1.442695
        %v505 = vpow.pop %v504
        %v506 = vsub.f32 %v487, %v499
        %v507 = vmul.f32 %v506, 1.442695
        %v508 = vpow.pop %v507
        %v509 = vsub.f32 %v496, %v499
        %v510 = vmul.f32 %v509, 1.442695
        %v511 = vpow.pop %v510
        %v512 = vadd.f32 %v502, %v505
        %v513 = vadd.f32 %v512, %v508
        %v514 = vadd.f32 %v513, %v511
        %v515 = vrcp.pop %v514
        %v516 = vmul.f32 %v502, %v515
        %v517 = vmul.f32 %v516, %v351
        %v518 = vmul.f32 %v505, %v515
        %v519 = vmul.f32 %v518, %v351
        %521 = vrot.lane.b32.xlu0 %v519, 120
        %v522 = vpop.permute.xlu0 %521
        %v524 = vadd.f32 %v517, %v522
        %v525 = vmul.f32 %v508, %v515
        %v526 = vmul.f32 %v525, %v351
        %528 = vrot.lane.b32.xlu0 %v526, 112
        %v529 = vpop.permute.xlu0 %528
        %v531 = vadd.f32 %v524, %v529
        %v532 = vmul.f32 %v511, %v515
        %v533 = vmul.f32 %v532, %v351
        %535 = vrot.lane.b32.xlu0 %v533, 104
        %v536 = vpop.permute.xlu0 %535
        %v538 = vadd.f32 %v531, %v536
        %539 = vrot.lane.b32.xlu0 %v420, 72
        %v540 = vpop.permute.xlu0 %539
        %v542 = vmul.f32 %v381, %v540
        %544 = vrot.lane.b32.xlu0 %v542, 120
        %v545 = vpop.permute.xlu0 %544
        %v547 = vsel %vm465, %v545, 0.0
        %548 = vadd.xlane.f32.xlu0 %v547
        %v549 = vpop.xlane.xlu0 %548
        %v550 = vmul.f32 %v549, 0.35355338
        %551 = vrot.lane.b32.xlu0 %v433, 64
        %v552 = vpop.permute.xlu0 %551
        %v554 = vmul.f32 %v381, %v552
        %556 = vrot.lane.b32.xlu0 %v554, 120
        %v557 = vpop.permute.xlu0 %556
        %v559 = vsel %vm465, %v557, 0.0
        %560 = vadd.xlane.f32.xlu0 %v559
        %v561 = vpop.xlane.xlu0 %560
        %v562 = vmul.f32 %v561, 0.35355338
        %563 = vrot.lane.b32.xlu0 %v446, 56
        %v564 = vpop.permute.xlu0 %563
        %v566 = vmul.f32 %v381, %v564
        %568 = vrot.lane.b32.xlu0 %v566, 120
        %v569 = vpop.permute.xlu0 %568
        %v571 = vsel %vm465, %v569, 0.0
        %572 = vadd.xlane.f32.xlu0 %v571
        %v573 = vpop.xlane.xlu0 %572
        %v574 = vmul.f32 %v573, 0.35355338
        %575 = vrot.lane.b32.xlu0 %v459, 48
        %v576 = vpop.permute.xlu0 %575
        %v578 = vmul.f32 %v381, %v576
        %580 = vrot.lane.b32.xlu0 %v578, 120
        %v581 = vpop.permute.xlu0 %580
        %v583 = vsel %vm465, %v581, 0.0
        %584 = vadd.xlane.f32.xlu0 %v583
        %v585 = vpop.xlane.xlu0 %584
        %v586 = vmul.f32 %v585, 0.35355338
        %v587 = vmax.f32 %v550, %v562
        %v588 = vmax.f32 %v587, %v574
        %v589 = vmax.f32 %v588, %v586
        %v590 = vsub.f32 %v550, %v589
        %v591 = vmul.f32 %v590, 1.442695
        %v592 = vpow.pop %v591
        %v593 = vsub.f32 %v562, %v589
        %v594 = vmul.f32 %v593, 1.442695
        %v595 = vpow.pop %v594
        %v596 = vsub.f32 %v574, %v589
        %v597 = vmul.f32 %v596, 1.442695
        %v598 = vpow.pop %v597
        %v599 = vsub.f32 %v586, %v589
        %v600 = vmul.f32 %v599, 1.442695
        %v601 = vpow.pop %v600
        %v602 = vadd.f32 %v592, %v595
        %v603 = vadd.f32 %v602, %v598
        %v604 = vadd.f32 %v603, %v601
        %v605 = vrcp.pop %v604
        %v606 = vmul.f32 %v592, %v605
        %v607 = vmul.f32 %v606, %v351
        %v608 = vmul.f32 %v595, %v605
        %v609 = vmul.f32 %v608, %v351
        %611 = vrot.lane.b32.xlu0 %v609, 120
        %v612 = vpop.permute.xlu0 %611
        %v614 = vadd.f32 %v607, %v612
        %v615 = vmul.f32 %v598, %v605
        %v616 = vmul.f32 %v615, %v351
        %618 = vrot.lane.b32.xlu0 %v616, 112
        %v619 = vpop.permute.xlu0 %618
        %v621 = vadd.f32 %v614, %v619
        %v622 = vmul.f32 %v601, %v605
        %v623 = vmul.f32 %v622, %v351
        %625 = vrot.lane.b32.xlu0 %v623, 104
        %v626 = vpop.permute.xlu0 %625
        %v628 = vadd.f32 %v621, %v626
        %629 = vrot.lane.b32.xlu0 %v420, 80
        %v630 = vpop.permute.xlu0 %629
        %v632 = vmul.f32 %v394, %v630
        %634 = vrot.lane.b32.xlu0 %v632, 112
        %v635 = vpop.permute.xlu0 %634
        %v637 = vsel %vm465, %v635, 0.0
        %638 = vadd.xlane.f32.xlu0 %v637
        %v639 = vpop.xlane.xlu0 %638
        %v640 = vmul.f32 %v639, 0.35355338
        %641 = vrot.lane.b32.xlu0 %v433, 72
        %v642 = vpop.permute.xlu0 %641
        %v644 = vmul.f32 %v394, %v642
        %646 = vrot.lane.b32.xlu0 %v644, 112
        %v647 = vpop.permute.xlu0 %646
        %v649 = vsel %vm465, %v647, 0.0
        %650 = vadd.xlane.f32.xlu0 %v649
        %v651 = vpop.xlane.xlu0 %650
        %v652 = vmul.f32 %v651, 0.35355338
        %653 = vrot.lane.b32.xlu0 %v446, 64
        %v654 = vpop.permute.xlu0 %653
        %v656 = vmul.f32 %v394, %v654
        %658 = vrot.lane.b32.xlu0 %v656, 112
        %v659 = vpop.permute.xlu0 %658
        %v661 = vsel %vm465, %v659, 0.0
        %662 = vadd.xlane.f32.xlu0 %v661
        %v663 = vpop.xlane.xlu0 %662
        %v664 = vmul.f32 %v663, 0.35355338
        %665 = vrot.lane.b32.xlu0 %v459, 56
        %v666 = vpop.permute.xlu0 %665
        %v668 = vmul.f32 %v394, %v666
        %670 = vrot.lane.b32.xlu0 %v668, 112
        %v671 = vpop.permute.xlu0 %670
        %v673 = vsel %vm465, %v671, 0.0
        %674 = vadd.xlane.f32.xlu0 %v673
        %v675 = vpop.xlane.xlu0 %674
        %v676 = vmul.f32 %v675, 0.35355338
        %v677 = vmax.f32 %v640, %v652
        %v678 = vmax.f32 %v677, %v664
        %v679 = vmax.f32 %v678, %v676
        %v680 = vsub.f32 %v640, %v679
        %v681 = vmul.f32 %v680, 1.442695
        %v682 = vpow.pop %v681
        %v683 = vsub.f32 %v652, %v679
        %v684 = vmul.f32 %v683, 1.442695
        %v685 = vpow.pop %v684
        %v686 = vsub.f32 %v664, %v679
        %v687 = vmul.f32 %v686, 1.442695
        %v688 = vpow.pop %v687
        %v689 = vsub.f32 %v676, %v679
        %v690 = vmul.f32 %v689, 1.442695
        %v691 = vpow.pop %v690
        %v692 = vadd.f32 %v682, %v685
        %v693 = vadd.f32 %v692, %v688
        %v694 = vadd.f32 %v693, %v691
        %v695 = vrcp.pop %v694
        %v696 = vmul.f32 %v682, %v695
        %v697 = vmul.f32 %v696, %v351
        %v698 = vmul.f32 %v685, %v695
        %v699 = vmul.f32 %v698, %v351
        %701 = vrot.lane.b32.xlu0 %v699, 120
        %v702 = vpop.permute.xlu0 %701
        %v704 = vadd.f32 %v697, %v702
        %v705 = vmul.f32 %v688, %v695
        %v706 = vmul.f32 %v705, %v351
        %708 = vrot.lane.b32.xlu0 %v706, 112
        %v709 = vpop.permute.xlu0 %708
        %v711 = vadd.f32 %v704, %v709
        %v712 = vmul.f32 %v691, %v695
        %v713 = vmul.f32 %v712, %v351
        %715 = vrot.lane.b32.xlu0 %v713, 104
        %v716 = vpop.permute.xlu0 %715
        %v718 = vadd.f32 %v711, %v716
        %719 = vrot.lane.b32.xlu0 %v420, 88
        %v720 = vpop.permute.xlu0 %719
        %v722 = vmul.f32 %v407, %v720
        %724 = vrot.lane.b32.xlu0 %v722, 104
        %v725 = vpop.permute.xlu0 %724
        %v727 = vsel %vm465, %v725, 0.0
        %728 = vadd.xlane.f32.xlu0 %v727
        %v729 = vpop.xlane.xlu0 %728
        %v730 = vmul.f32 %v729, 0.35355338
        %731 = vrot.lane.b32.xlu0 %v433, 80
        %v732 = vpop.permute.xlu0 %731
        %v734 = vmul.f32 %v407, %v732
        %736 = vrot.lane.b32.xlu0 %v734, 104
        %v737 = vpop.permute.xlu0 %736
        %v739 = vsel %vm465, %v737, 0.0
        %740 = vadd.xlane.f32.xlu0 %v739
        %v741 = vpop.xlane.xlu0 %740
        %v742 = vmul.f32 %v741, 0.35355338
        %743 = vrot.lane.b32.xlu0 %v446, 72
        %v744 = vpop.permute.xlu0 %743
        %v746 = vmul.f32 %v407, %v744
        %748 = vrot.lane.b32.xlu0 %v746, 104
        %v749 = vpop.permute.xlu0 %748
        %v751 = vsel %vm465, %v749, 0.0
        %752 = vadd.xlane.f32.xlu0 %v751
        %v753 = vpop.xlane.xlu0 %752
        %v754 = vmul.f32 %v753, 0.35355338
        %755 = vrot.lane.b32.xlu0 %v459, 64
        %v756 = vpop.permute.xlu0 %755
        %v758 = vmul.f32 %v407, %v756
        %760 = vrot.lane.b32.xlu0 %v758, 104
        %v761 = vpop.permute.xlu0 %760
        %v763 = vsel %vm465, %v761, 0.0
        %764 = vadd.xlane.f32.xlu0 %v763
        %v765 = vpop.xlane.xlu0 %764
        %v766 = vmul.f32 %v765, 0.35355338
        %v767 = vmax.f32 %v730, %v742
        %v768 = vmax.f32 %v767, %v754
        %v769 = vmax.f32 %v768, %v766
        %v770 = vsub.f32 %v730, %v769
        %v771 = vmul.f32 %v770, 1.442695
        %v772 = vpow.pop %v771
        %v773 = vsub.f32 %v742, %v769
        %v774 = vmul.f32 %v773, 1.442695
        %v775 = vpow.pop %v774
        %v776 = vsub.f32 %v754, %v769
        %v777 = vmul.f32 %v776, 1.442695
        %v778 = vpow.pop %v777
        %v779 = vsub.f32 %v766, %v769
        %v780 = vmul.f32 %v779, 1.442695
        %v781 = vpow.pop %v780
        %v782 = vadd.f32 %v772, %v775
        %v783 = vadd.f32 %v782, %v778
        %v784 = vadd.f32 %v783, %v781
        %v785 = vrcp.pop %v784
        %v786 = vmul.f32 %v772, %v785
        %v787 = vmul.f32 %v786, %v351
        %v788 = vmul.f32 %v775, %v785
        %v789 = vmul.f32 %v788, %v351
        %791 = vrot.lane.b32.xlu0 %v789, 120
        %v792 = vpop.permute.xlu0 %791
        %v794 = vadd.f32 %v787, %v792
        %v795 = vmul.f32 %v778, %v785
        %v796 = vmul.f32 %v795, %v351
        %798 = vrot.lane.b32.xlu0 %v796, 112
        %v799 = vpop.permute.xlu0 %798
        %v801 = vadd.f32 %v794, %v799
        %v802 = vmul.f32 %v781, %v785
        %v803 = vmul.f32 %v802, %v351
        %805 = vrot.lane.b32.xlu0 %v803, 104
        %v806 = vpop.permute.xlu0 %805
        %v808 = vadd.f32 %v801, %v806
        %810 = vrot.lane.b32.xlu0 %v628, 8
        %v811 = vpop.permute.xlu0 %810
        %814 = vrot.lane.b32.xlu0 %v718, 16
        %v815 = vpop.permute.xlu0 %814
        %818 = vrot.lane.b32.xlu0 %v808, 24
        %v819 = vpop.permute.xlu0 %818
        %v821 = vsel %vm465, %v538, %v811
        %vm822 = vcmask 130048
        %v823 = vsel %vm822, %v821, %v815
        %vm824 = vcmask 195584
        %v825 = vsel %vm824, %v823, %v819
        %826 = vst.msk [vmem:[%s283] sm:$0xff] %vm310, %v825
        %s827 = sand.u32 %s146, 1
        %s828 = scalar_lea.sflag [#allocation4], %s827
        %s829 = sand.u32 %s146, 1
        %s830 = smul.addr %s829, 8
        %s831 = scalar_lea.vmem [#allocation10], %s830
        // Predicated region
        $region53: #{tpu_custom_call.1} parent=35 // pred_check
          %p832 = pneg %p156
        $region54: #{tpu_custom_call.1} parent=35 // pred_check_branch
          %834 = sbr.rel (%p832) target = $region56
        $region55: #{tpu_custom_call.1} parent=35 // pred_region
          %s836 = ssub.s32 128, 128
          %837 = vsyncadd %s828, %s836
          %s838 = sadd.s32 %s28, %s27
          %s839 = smul.addr %s838, 128
          %s840 = scalar_lea.hbm %s4, %s839
          %s842 = sshll.u32 %s831, 4
          %s843 = int_to_ptr.vmem [resolvable:$true] %s842
          %845 = dma.vmem_to_hbm [thread:$0]  %s843, 128, %s840, %s828
        $region56: #{tpu_custom_call.1} parent=35 // pred_fallthru
          _
      $region36: #{tpu_custom_call.1} parent=5 // pred_fallthru
        _
      %p846 = scmp.le.s32.totalorder 2, %s18
      // Predicated region
      $region57: #{tpu_custom_call.1} parent=5 // pred_check
        %p847 = pneg %p846
      $region58: #{tpu_custom_call.1} parent=5 // pred_check_branch
        %849 = sbr.rel (%p847) target = $region60
      $region59: #{tpu_custom_call.1} parent=5 // pred_region
        %s850 = ssub.s32 %s18, 2
        // Predicated region
        $region61: #{tpu_custom_call.1} parent=59 // pred_check
          %p851 = pneg %p162
        $region62: #{tpu_custom_call.1} parent=59 // pred_check_branch
          %853 = sbr.rel (%p851) target = $region64
        $region63: #{tpu_custom_call.1} parent=59 // pred_region
          %s854 = sand.u32 %s147, 1
          %s855 = scalar_lea.sflag [#allocation4], %s854
          %s856 = sand.u32 %s147, 1
          %s857 = smul.addr %s856, 8
          %s858 = scalar_lea.vmem [#allocation10], %s857
          %859 = dma.done %s855, 128
        $region64: #{tpu_custom_call.1} parent=59 // pred_fallthru
          _
      $region60: #{tpu_custom_call.1} parent=5 // pred_fallthru
        _
    $region6: #{tpu_custom_call.1} parent=1 // loop_footer
      %s22 = sadd.s32 1, %s18
    $region7: #{tpu_custom_call.1} parent=1 // loop_footer_branch
      %17 = sbr.rel target = $region3
    $region8: #{tpu_custom_call.1} parent=1 // loop_exit
      _
    %860 = vsyncpa [#allocation3], 1
    %s861 = scalar_lea.sflag [#allocation3], 1
    %862 = vsyncpa %s861, 1
    %863 = vsyncpa [#allocation6], 1
    %864 = vsyncpa [#allocation9], 1
    %865 = vsyncpa [#allocation4], 1
    %s866 = scalar_lea.sflag [#allocation4], 1
    %867 = vsyncpa %s866, 1

</llo_original>
